<compile_context>
chip_gen: v5e
topology: v5e:2x2
jax: 0.10.0
libtpu: 0.0.40
codegen_flags: <defaults>
</compile_context>

<pallas_src>
import functools

import jax
import jax.numpy as jnp
from jax import lax
from jax.experimental import pallas as pl
from jax.experimental.pallas import tpu as pltpu


def rope_kernel(q_ref, k_ref, cs_ref, q_out_ref, k_out_ref):
    # q_ref  : (tq, H,  D) VMEM
    # k_ref  : (tq, KH, D) VMEM
    # cs_ref : (tq, 1,  D) VMEM  -- fused [cos | sin] row per token
    D = q_ref.shape[-1]
    half = D // 2

    def rotate_half(x):
        if D % 128 == 0:
            # Full-lane rotation goes to the XLU slot (free next to the VPU
            # muls); shift == D//2 so roll direction does not matter.
            return pltpu.roll(x, shift=half, axis=-1)
        # TODO(synk): for D in {64, 80, 96} a lane-dense (T, heads*D) layout
        # with a strided roll would avoid masked vst stores; concat fallback.
        return jnp.concatenate([x[..., half:], x[..., :half]], axis=-1)

    # Build [cos | cos] and [-sin | sin] once per tile from the single fused
    # table; amortized over H + KH heads and riding on VPU/XLU slack.
    cs = cs_ref[...].astype(jnp.float32)                      # (tq, 1, D) = [cos | sin]
    cs_r = rotate_half(cs)                                    # [sin | cos]
    is_lo = lax.broadcasted_iota(jnp.int32, (1, 1, D), 2) < half
    cos_full = jnp.where(is_lo, cs, cs_r)                     # [ cos | cos]
    sin_signed = jnp.where(is_lo, -cs_r, cs)                  # [-sin | sin]

    def rotate(x_ref, o_ref):
        x = x_ref[...].astype(jnp.float32)                    # (tq, heads, D)
        # out[:half] = x1*cos - x2*sin ; out[half:] = x2*cos + x1*sin
        o_ref[...] = (x * cos_full + rotate_half(x) * sin_signed).astype(o_ref.dtype)

    rotate(q_ref, q_out_ref)
    rotate(k_ref, k_out_ref)


# Budget the pipeline blocks against 32 MiB and ask for a 48 MiB scoped limit:
# fits under v7x's 64 MiB physical VMEM, generous on v5e/v6e (128 MiB).
_BLOCK_VMEM_BUDGET = 32 * 1024 * 1024
_VMEM_LIMIT_BYTES = 48 * 1024 * 1024


def _choose_token_tile(T, H, KH, D, qk_itemsize):
    """Largest token tile whose *padded* double-buffered blocks fit the budget."""
    sub_tile = 8 * max(1, 4 // qk_itemsize)      # 8 (f32) / 16 (bf16,f16) / 32 (i8)
    d_pad = -(-D // 128) * 128
    h_pad = -(-H // sub_tile) * sub_tile
    kh_pad = -(-KH // sub_tile) * sub_tile
    # Per-token padded VMEM of one grid step: q/k (in + out) plus the (tq, 1, D)
    # fp32 table whose unit sublane dim pads to 8.  Everything double-buffered.
    per_token = 2 * (2 * (h_pad + kh_pad) * d_pad * qk_itemsize + 8 * d_pad * 4)
    tq = _BLOCK_VMEM_BUDGET // max(per_token, 1)
    tq = max(8, min(2048, (tq // 8) * 8))
    if tq >= T:
        if T >= 64:
            # Keep >= 2 grid steps so ("parallel",) can shard across both
            # TensorCores on v7x; negligible extra per-step cost on v5e/v6e.
            tq = min(tq, (((T + 1) // 2 + 7) // 8) * 8)
        else:
            tq = T       # single full-extent block is always legal
    return tq


@functools.partial(jax.jit, static_argnames=("dim",), donate_argnums=(1, 2))
def rotary_embedding_neox(positions, query, key, cos_sin_cache, *, dim):
    """Applies NeoX rotary embedding to query/key. Returns new (query, key)."""
    T, H, D = query.shape
    Tk, KH, Dk = key.shape
    assert D == dim and Dk == dim and Tk == T
    assert cos_sin_cache.shape[-1] == dim

    # Only wrapper-side pass: gather one fused [cos | sin] row per token.
    # reshape to (T, 1, D) is a free metadata change; the kernel broadcasts it
    # over the head (sublane) axis.
    cs = cos_sin_cache[positions].astype(jnp.float32).reshape(T, 1, D)

    tq = _choose_token_tile(T, H, KH, D, query.dtype.itemsize)
    grid = (pl.cdiv(T, tq),)

    q_bytes = query.size * query.dtype.itemsize
    k_bytes = key.size * key.dtype.itemsize
    cost = pl.CostEstimate(
        flops=3 * (query.size + key.size),
        transcendentals=0,
        bytes_accessed=2 * (q_bytes + k_bytes) + T * D * 4,
    )

    q_out, k_out = pl.pallas_call(
        rope_kernel,
        out_shape=(
            jax.ShapeDtypeStruct(query.shape, query.dtype),
            jax.ShapeDtypeStruct(key.shape, key.dtype),
        ),
        grid=grid,
        in_specs=[
            pl.BlockSpec((tq, H, D), lambda i: (i, 0, 0)),
            pl.BlockSpec((tq, KH, D), lambda i: (i, 0, 0)),
            pl.BlockSpec((tq, 1, D), lambda i: (i, 0, 0)),
        ],
        out_specs=(
            pl.BlockSpec((tq, H, D), lambda i: (i, 0, 0)),
            pl.BlockSpec((tq, KH, D), lambda i: (i, 0, 0)),
        ),
        # RoPE is in-place in the original module; q/k are donated at the jit
        # boundary so these aliases are true in-place updates (no copies).
        input_output_aliases={0: 0, 1: 1},
        compiler_params=pltpu.CompilerParams(
            dimension_semantics=("parallel",),     # tokens independent -> megacore
            vmem_limit_bytes=_VMEM_LIMIT_BYTES,
        ),
        cost_estimate=cost,
    )(query, key, cs)
    return q_out, k_out


class EETRotaryEmbedding:
    """JAX/Pallas port of the PyTorch EETRotaryEmbedding module."""

    def __init__(self, dim, max_position_embeddings=2048, base=10000):
        self.dim = dim
        self.max_position_embeddings = max_position_embeddings
        self.base = base
        inv_freq = 1.0 / (base ** (jnp.arange(0, dim, 2, dtype=jnp.float32) / dim))
        self.inv_freq = inv_freq
        t = jnp.arange(max_position_embeddings, dtype=jnp.float32)
        freqs = jnp.einsum("i,j->ij", t, inv_freq)             # (max_pos, dim//2)
        cache = jnp.concatenate([jnp.cos(freqs), jnp.sin(freqs)], axis=-1)
        # PyTorch stores the cache with .half(); round-trip through fp16 so the
        # numerics match, keep fp32 storage (tiny table, clean TPU lowering).
        self.cos_sin_cache = cache.astype(jnp.float16).astype(jnp.float32)

    def forward(self, query, key, positions):
        return rotary_embedding_neox(
            positions, query, key, self.cos_sin_cache, dim=self.dim
        )


def _rope_reference(positions, q, k, cache):
    half = cache.shape[-1] // 2
    cos = cache[positions, :half][:, None, :]
    sin = cache[positions, half:][:, None, :]

    def rot(x):
        x1, x2 = x[..., :half], x[..., half:]
        return jnp.concatenate([x1 * cos - x2 * sin, x2 * cos + x1 * sin], axis=-1)

    return rot(q), rot(k)


if __name__ == "__main__":
    T, H, KH, DIM, MAX_POS = 8, 4, 2, 32, 64

    key0 = jax.random.PRNGKey(0)
    kq, kk, kp = jax.random.split(key0, 3)
    query = jax.random.normal(kq, (T, H, DIM), dtype=jnp.float32)
    kkey = jax.random.normal(kk, (T, KH, DIM), dtype=jnp.float32)
    positions = jax.random.randint(kp, (T,), 0, MAX_POS, dtype=jnp.int32)

    rope = EETRotaryEmbedding(DIM, max_position_embeddings=MAX_POS, base=10000)

    # Reference is computed first: query/key are donated to the kernel call.
    q_expect, k_expect = _rope_reference(positions, query, kkey, rope.cos_sin_cache)
    q_expect = jax.block_until_ready(q_expect)
    k_expect = jax.block_until_ready(k_expect)

    q_out, k_out = rope.forward(query, kkey, positions)
    q_out = jax.block_until_ready(q_out)
    k_out = jax.block_until_ready(k_out)

    assert jnp.allclose(q_out, q_expect, atol=1e-5, rtol=1e-5)
    assert jnp.allclose(k_out, k_expect, atol=1e-5, rtol=1e-5)

    print("KERNEL_OK")
</pallas_src>

<mosaic_0001>
module attributes {stable_mosaic.version = 11 : i64} {
  func.func @rope_kernel(%arg0: i32, %arg1: memref<8x4x32xf32, #tpu.memory_space<vmem>>, %arg2: memref<8x2x32xf32, #tpu.memory_space<vmem>>, %arg3: memref<8x1x32xf32, #tpu.memory_space<vmem>>, %arg4: memref<8x4x32xf32, #tpu.memory_space<vmem>>, %arg5: memref<8x2x32xf32, #tpu.memory_space<vmem>>) attributes {dimension_semantics = [#tpu.dimension_semantics<parallel>], iteration_bounds = array<i64: 1>, scalar_prefetch = 0 : i64, scratch_operands = 0 : i64, tpu.core_type = #tpu.core_type<tc>, window_params = [{transform_indices = @transform_0, window_bounds = array<i64: 8, 4, 32>}, {transform_indices = @transform_1, window_bounds = array<i64: 8, 2, 32>}, {transform_indices = @transform_2, window_bounds = array<i64: 8, 1, 32>}, {transform_indices = @transform_3, window_bounds = array<i64: 8, 4, 32>}, {transform_indices = @transform_4, window_bounds = array<i64: 8, 2, 32>}]} {
    %c0 = arith.constant 0 : index
    %c0_0 = arith.constant 0 : index
    %c0_1 = arith.constant 0 : index
    %0 = vector.load %arg3[%c0, %c0_0, %c0_1] : memref<8x1x32xf32, #tpu.memory_space<vmem>>, vector<8x1x32xf32>
    %1 = vector.extract_strided_slice %0 {offsets = [0, 0, 16], sizes = [8, 1, 16], strides = [1, 1, 1]} : vector<8x1x32xf32> to vector<8x1x16xf32>
    %2 = vector.extract_strided_slice %0 {offsets = [0, 0, 0], sizes = [8, 1, 16], strides = [1, 1, 1]} : vector<8x1x32xf32> to vector<8x1x16xf32>
    %3 = tpu.concatenate %1, %2 in 2 : vector<8x1x16xf32>, vector<8x1x16xf32> -> vector<8x1x32xf32>
    %4 = tpu.iota {dimensions = array<i32: 2>} : vector<1x1x32xi32>
    %c16_i32 = arith.constant 16 : i32
    %5 = vector.broadcast %c16_i32 : i32 to vector<1x1x32xi32>
    %6 = arith.cmpi slt, %4, %5 : vector<1x1x32xi32>
    %7 = vector.shape_cast %6 : vector<1x1x32xi1> to vector<1x1x32xi1>
    %8 = vector.broadcast %7 : vector<1x1x32xi1> to vector<8x1x32xi1>
    %9 = arith.select %8, %0, %3 : vector<8x1x32xi1>, vector<8x1x32xf32>
    %cst = arith.constant 0.000000e+00 : f32
    %10 = vector.broadcast %cst : f32 to vector<8x1x32xf32>
    %11 = arith.subf %10, %3 : vector<8x1x32xf32>
    %12 = vector.shape_cast %6 : vector<1x1x32xi1> to vector<1x1x32xi1>
    %13 = vector.broadcast %12 : vector<1x1x32xi1> to vector<8x1x32xi1>
    %14 = arith.select %13, %11, %0 : vector<8x1x32xi1>, vector<8x1x32xf32>
    %c0_2 = arith.constant 0 : index
    %c0_3 = arith.constant 0 : index
    %c0_4 = arith.constant 0 : index
    %15 = vector.load %arg1[%c0_2, %c0_3, %c0_4] : memref<8x4x32xf32, #tpu.memory_space<vmem>>, vector<8x4x32xf32>
    %16 = vector.broadcast %9 : vector<8x1x32xf32> to vector<8x4x32xf32>
    %17 = arith.mulf %15, %16 : vector<8x4x32xf32>
    %18 = vector.extract_strided_slice %15 {offsets = [0, 0, 16], sizes = [8, 4, 16], strides = [1, 1, 1]} : vector<8x4x32xf32> to vector<8x4x16xf32>
    %19 = vector.extract_strided_slice %15 {offsets = [0, 0, 0], sizes = [8, 4, 16], strides = [1, 1, 1]} : vector<8x4x32xf32> to vector<8x4x16xf32>
    %20 = tpu.concatenate %18, %19 in 2 : vector<8x4x16xf32>, vector<8x4x16xf32> -> vector<8x4x32xf32>
    %21 = vector.broadcast %14 : vector<8x1x32xf32> to vector<8x4x32xf32>
    %22 = arith.mulf %20, %21 : vector<8x4x32xf32>
    %23 = arith.addf %17, %22 : vector<8x4x32xf32>
    %c0_5 = arith.constant 0 : index
    %c0_6 = arith.constant 0 : index
    %c0_7 = arith.constant 0 : index
    %24 = vector.load %arg4[%c0_5, %c0_6, %c0_7] : memref<8x4x32xf32, #tpu.memory_space<vmem>>, vector<8x4x32xf32>
    tpu.vector_store %arg4[%c0_5, %c0_6, %c0_7], %23 {strides = array<i32>} : memref<8x4x32xf32, #tpu.memory_space<vmem>>, vector<8x4x32xf32>,
    %c0_8 = arith.constant 0 : index
    %c0_9 = arith.constant 0 : index
    %c0_10 = arith.constant 0 : index
    %25 = vector.load %arg2[%c0_8, %c0_9, %c0_10] : memref<8x2x32xf32, #tpu.memory_space<vmem>>, vector<8x2x32xf32>
    %26 = vector.broadcast %9 : vector<8x1x32xf32> to vector<8x2x32xf32>
    %27 = arith.mulf %25, %26 : vector<8x2x32xf32>
    %28 = vector.extract_strided_slice %25 {offsets = [0, 0, 16], sizes = [8, 2, 16], strides = [1, 1, 1]} : vector<8x2x32xf32> to vector<8x2x16xf32>
    %29 = vector.extract_strided_slice %25 {offsets = [0, 0, 0], sizes = [8, 2, 16], strides = [1, 1, 1]} : vector<8x2x32xf32> to vector<8x2x16xf32>
    %30 = tpu.concatenate %28, %29 in 2 : vector<8x2x16xf32>, vector<8x2x16xf32> -> vector<8x2x32xf32>
    %31 = vector.broadcast %14 : vector<8x1x32xf32> to vector<8x2x32xf32>
    %32 = arith.mulf %30, %31 : vector<8x2x32xf32>
    %33 = arith.addf %27, %32 : vector<8x2x32xf32>
    %c0_11 = arith.constant 0 : index
    %c0_12 = arith.constant 0 : index
    %c0_13 = arith.constant 0 : index
    %34 = vector.load %arg5[%c0_11, %c0_12, %c0_13] : memref<8x2x32xf32, #tpu.memory_space<vmem>>, vector<8x2x32xf32>
    tpu.vector_store %arg5[%c0_11, %c0_12, %c0_13], %33 {strides = array<i32>} : memref<8x2x32xf32, #tpu.memory_space<vmem>>, vector<8x2x32xf32>,
    return
  }
  func.func @transform_0(%arg0: i32) -> (i32, i32, i32) {
    %c0_i32 = arith.constant 0 : i32
    %c0_i32_0 = arith.constant 0 : i32
    %c0_i32_1 = arith.constant 0 : i32
    return %arg0, %c0_i32, %c0_i32_0 : i32, i32, i32
  }
  func.func @transform_1(%arg0: i32) -> (i32, i32, i32) {
    %c0_i32 = arith.constant 0 : i32
    %c0_i32_0 = arith.constant 0 : i32
    %c0_i32_1 = arith.constant 0 : i32
    return %arg0, %c0_i32, %c0_i32_0 : i32, i32, i32
  }
  func.func @transform_2(%arg0: i32) -> (i32, i32, i32) {
    %c0_i32 = arith.constant 0 : i32
    %c0_i32_0 = arith.constant 0 : i32
    %c0_i32_1 = arith.constant 0 : i32
    return %arg0, %c0_i32, %c0_i32_0 : i32, i32, i32
  }
  func.func @transform_3(%arg0: i32) -> (i32, i32, i32) {
    %c0_i32 = arith.constant 0 : i32
    %c0_i32_0 = arith.constant 0 : i32
    %c0_i32_1 = arith.constant 0 : i32
    return %arg0, %c0_i32, %c0_i32_0 : i32, i32, i32
  }
  func.func @transform_4(%arg0: i32) -> (i32, i32, i32) {
    %c0_i32 = arith.constant 0 : i32
    %c0_i32_0 = arith.constant 0 : i32
    %c0_i32_1 = arith.constant 0 : i32
    return %arg0, %c0_i32, %c0_i32_0 : i32, i32, i32
  }
}

</mosaic_0001>

<llo_original>
// kernel: rotary_embedding_neox.1
$region0: #{rotary_embedding_neox.1}
  #allocation0 [shape = 'u32[]', space=smem, size = 0x4, offset = 0x4, fixed_abs, tag = 'smem constant byte address 0x4 - core index']
  #allocation1 [shape = 'u32[72,128]{1,0:T(1,128)}', space=vmem, size = 0x9000, scoped, tag = 'internal scratch']
  %s0 = inlined_call_operand.hbm [shape: f32[8,4,32], index: 0, kind: input, shape index: {}, may-alias: {0,3}]
  %s1 = inlined_call_operand.hbm [shape: f32[8,2,32], index: 1, kind: input, shape index: {}, may-alias: {1,4}]
  %s2 = inlined_call_operand.vmem [shape: f32[8,1,32], index: 2, kind: input, shape index: {}]
  %s3 = inlined_call_operand.hbm [shape: f32[8,4,32], index: 3, kind: output, shape index: {0}, may-alias: {0,3}]
  %s4 = inlined_call_operand.hbm [shape: f32[8,2,32], index: 4, kind: output, shape index: {1}, may-alias: {1,4}]
  %5 = xla_tuple %s3, %s4
  %s6 = sld [smem:[#allocation0]]
  $region38: #{rotary_embedding_neox.1} parent=0
    _
  %s8 = ssub.s32 1, %s6
  %s9 = scalar_select 0, %s8, %s6
  $region1: #{rotary_embedding_neox.1} parent=0
    #allocation2 [shape = 'u8[16384]{0}', space=vmem, size = 0x4000, scoped, tag = 'input window, operand 0, single buffered']
    #allocation3 [shape = 's32[1]{0}', space=sflag, size = 0x4, scoped, tag = 'scoped memory for rotary_embedding_neox.1']
    #allocation4 [shape = 's32[1]{0}', space=sflag, size = 0x4, scoped, tag = 'scoped memory for rotary_embedding_neox.1']
    #allocation5 [shape = 'u8[8192]{0}', space=vmem, size = 0x2000, scoped, tag = 'input window, operand 1, single buffered']
    #allocation6 [shape = 's32[1]{0}', space=sflag, size = 0x4, scoped, tag = 'scoped memory for rotary_embedding_neox.1']
    #allocation7 [shape = 'u8[16384]{0}', space=vmem, size = 0x4000, scoped, tag = 'output window, operand 0, single buffered']
    #allocation8 [shape = 'u8[8192]{0}', space=vmem, size = 0x2000, scoped, tag = 'output window, operand 1, single buffered']
    #allocation9 [shape = 's32[1]{0}', space=sflag, size = 0x4, scoped, tag = 'scoped memory for rotary_embedding_neox.1']
    %10 = vsyncpa [#allocation3], 0
    %11 = vsyncpa [#allocation6], 0
    %12 = vsyncpa [#allocation4], 0
    %13 = vsyncpa [#allocation9], 0
    // Predicated region
    $region2: #{rotary_embedding_neox.1} parent=1 // pred_check
      _
    $region3: #{rotary_embedding_neox.1} parent=1 // pred_check_branch
      %15 = sbr.rel (0) target = $region5
    $region4: #{rotary_embedding_neox.1} parent=1 // pred_region
      %17 = vsyncadd [#allocation3], 0
      %s18 = sshll.u32 %s0, 4
      %s19 = int_to_ptr.hbm [resolvable:$true] %s18
      %s20 = sshll.u32 [#allocation2], 4
      %s21 = int_to_ptr.vmem [resolvable:$true] %s20
      %26 = dma.hbm_to_vmem [thread:$0]  %s19, 512, %s21, [#allocation3], 64, 64, 4
    $region5: #{rotary_embedding_neox.1} parent=1 // pred_fallthru
      _
    // Predicated region
    $region6: #{rotary_embedding_neox.1} parent=1 // pred_check
      _
    $region7: #{rotary_embedding_neox.1} parent=1 // pred_check_branch
      %28 = sbr.rel (0) target = $region9
    $region8: #{rotary_embedding_neox.1} parent=1 // pred_region
      %30 = vsyncadd [#allocation6], 0
      %s31 = sshll.u32 %s1, 4
      %s32 = int_to_ptr.hbm [resolvable:$true] %s31
      %s33 = sshll.u32 [#allocation5], 4
      %s34 = int_to_ptr.vmem [resolvable:$true] %s33
      %39 = dma.hbm_to_vmem [thread:$0]  %s32, 256, %s34, [#allocation6], 32, 32, 2
    $region9: #{rotary_embedding_neox.1} parent=1 // pred_fallthru
      _
    // Predicated region
    $region10: #{rotary_embedding_neox.1} parent=1 // pred_check
      _
    $region11: #{rotary_embedding_neox.1} parent=1 // pred_check_branch
      %41 = sbr.rel (0) target = $region13
    $region12: #{rotary_embedding_neox.1} parent=1 // pred_region
      _
    $region13: #{rotary_embedding_neox.1} parent=1 // pred_fallthru
      _
    // Predicated region
    $region14: #{rotary_embedding_neox.1} parent=1 // pred_check
      _
    $region15: #{rotary_embedding_neox.1} parent=1 // pred_check_branch
      %43 = sbr.rel (0) target = $region17
    $region16: #{rotary_embedding_neox.1} parent=1 // pred_region
      %45 = dma.done [#allocation3], 512
    $region17: #{rotary_embedding_neox.1} parent=1 // pred_fallthru
      _
    // Predicated region
    $region18: #{rotary_embedding_neox.1} parent=1 // pred_check
      _
    $region19: #{rotary_embedding_neox.1} parent=1 // pred_check_branch
      %47 = sbr.rel (0) target = $region21
    $region20: #{rotary_embedding_neox.1} parent=1 // pred_region
      %49 = dma.done [#allocation6], 256
    $region21: #{rotary_embedding_neox.1} parent=1 // pred_fallthru
      _
    %v50 = vld [vmem:[%s2] sm:$0x1]
    %v51 = vld [vmem:[%s2 + $0x1] sm:$0x1]
    %v52 = vld [vmem:[%s2 + $0x2] sm:$0x1]
    %v53 = vld [vmem:[%s2 + $0x3] sm:$0x1]
    %v54 = vld [vmem:[%s2 + $0x4] sm:$0x1]
    %v55 = vld [vmem:[%s2 + $0x5] sm:$0x1]
    %v56 = vld [vmem:[%s2 + $0x6] sm:$0x1]
    %v57 = vld [vmem:[%s2 + $0x7] sm:$0x1]
    %v66 = vperm.slane %v50, 0
    %v67 = vperm.slane %v51, 0
    %v68 = vperm.slane %v52, 0
    %v69 = vperm.slane %v53, 0
    %v70 = vperm.slane %v54, 0
    %v71 = vperm.slane %v55, 0
    %v72 = vperm.slane %v56, 0
    %v73 = vperm.slane %v57, 0
    %74 = vrot.lane.b32.xlu0 %v66, 112
    %v75 = vpop.permute.xlu0 %74
    %76 = vrot.lane.b32.xlu0 %v67, 112
    %v77 = vpop.permute.xlu0 %76
    %78 = vrot.lane.b32.xlu0 %v68, 112
    %v79 = vpop.permute.xlu0 %78
    %80 = vrot.lane.b32.xlu0 %v69, 112
    %v81 = vpop.permute.xlu0 %80
    %82 = vrot.lane.b32.xlu0 %v70, 112
    %v83 = vpop.permute.xlu0 %82
    %84 = vrot.lane.b32.xlu0 %v71, 112
    %v85 = vpop.permute.xlu0 %84
    %86 = vrot.lane.b32.xlu0 %v72, 112
    %v87 = vpop.permute.xlu0 %86
    %88 = vrot.lane.b32.xlu0 %v73, 112
    %v89 = vpop.permute.xlu0 %88
    %98 = vrot.lane.b32.xlu0 %v66, 16
    %v99 = vpop.permute.xlu0 %98
    %100 = vrot.lane.b32.xlu0 %v67, 16
    %v101 = vpop.permute.xlu0 %100
    %102 = vrot.lane.b32.xlu0 %v68, 16
    %v103 = vpop.permute.xlu0 %102
    %104 = vrot.lane.b32.xlu0 %v69, 16
    %v105 = vpop.permute.xlu0 %104
    %106 = vrot.lane.b32.xlu0 %v70, 16
    %v107 = vpop.permute.xlu0 %106
    %108 = vrot.lane.b32.xlu0 %v71, 16
    %v109 = vpop.permute.xlu0 %108
    %110 = vrot.lane.b32.xlu0 %v72, 16
    %v111 = vpop.permute.xlu0 %110
    %112 = vrot.lane.b32.xlu0 %v73, 16
    %v113 = vpop.permute.xlu0 %112
    %vm122 = vcmask 130048
    %v123 = vsel %vm122, %v75, %v99
    %v124 = vsel %vm122, %v77, %v101
    %v125 = vsel %vm122, %v79, %v103
    %v126 = vsel %vm122, %v81, %v105
    %v127 = vsel %vm122, %v83, %v107
    %v128 = vsel %vm122, %v85, %v109
    %v129 = vsel %vm122, %v87, %v111
    %v130 = vsel %vm122, %v89, %v113
    %v131 = vlaneseq
    %v132 = vand.u32 %v131, 127
    %vm133 = vcmp.lt.s32.totalorder %v132, 16
    %v134 = vsel %vm133, 1, 0
    %vm135 = vcmp.eq.s32.totalorder %v134, 1
    %v136 = vsel %vm135, %v50, %v123
    %v137 = vsel %vm135, %v51, %v124
    %v138 = vsel %vm135, %v52, %v125
    %v139 = vsel %vm135, %v53, %v126
    %v140 = vsel %vm135, %v54, %v127
    %v141 = vsel %vm135, %v55, %v128
    %v142 = vsel %vm135, %v56, %v129
    %v143 = vsel %vm135, %v57, %v130
    %v144 = vsub.f32 0.0, %v123
    %v145 = vsub.f32 0.0, %v124
    %v146 = vsub.f32 0.0, %v125
    %v147 = vsub.f32 0.0, %v126
    %v148 = vsub.f32 0.0, %v127
    %v149 = vsub.f32 0.0, %v128
    %v150 = vsub.f32 0.0, %v129
    %v151 = vsub.f32 0.0, %v130
    %v152 = vsel %vm135, %v144, %v50
    %v153 = vsel %vm135, %v145, %v51
    %v154 = vsel %vm135, %v146, %v52
    %v155 = vsel %vm135, %v147, %v53
    %v156 = vsel %vm135, %v148, %v54
    %v157 = vsel %vm135, %v149, %v55
    %v158 = vsel %vm135, %v150, %v56
    %v159 = vsel %vm135, %v151, %v57
    %v160 = vld [vmem:[#allocation2] sm:$0xf]
    %v161 = vld [vmem:[#allocation2 + $0x4] sm:$0xf]
    %v162 = vld [vmem:[#allocation2 + $0x8] sm:$0xf]
    %v163 = vld [vmem:[#allocation2 + $0xc] sm:$0xf]
    %v164 = vld [vmem:[#allocation2 + $0x10] sm:$0xf]
    %v165 = vld [vmem:[#allocation2 + $0x14] sm:$0xf]
    %v166 = vld [vmem:[#allocation2 + $0x18] sm:$0xf]
    %v167 = vld [vmem:[#allocation2 + $0x1c] sm:$0xf]
    %v168 = vperm.slane %v136, 0
    %v169 = vperm.slane %v137, 0
    %v170 = vperm.slane %v138, 0
    %v171 = vperm.slane %v139, 0
    %v172 = vperm.slane %v140, 0
    %v173 = vperm.slane %v141, 0
    %v174 = vperm.slane %v142, 0
    %v175 = vperm.slane %v143, 0
    %v176 = vmul.f32 %v160, %v168
    %v177 = vmul.f32 %v161, %v169
    %v178 = vmul.f32 %v162, %v170
    %v179 = vmul.f32 %v163, %v171
    %v180 = vmul.f32 %v164, %v172
    %v181 = vmul.f32 %v165, %v173
    %v182 = vmul.f32 %v166, %v174
    %v183 = vmul.f32 %v167, %v175
    %192 = vrot.lane.b32.xlu0 %v160, 112
    %v193 = vpop.permute.xlu0 %192
    %194 = vrot.lane.b32.xlu0 %v161, 112
    %v195 = vpop.permute.xlu0 %194
    %196 = vrot.lane.b32.xlu0 %v162, 112
    %v197 = vpop.permute.xlu0 %196
    %198 = vrot.lane.b32.xlu0 %v163, 112
    %v199 = vpop.permute.xlu0 %198
    %200 = vrot.lane.b32.xlu0 %v164, 112
    %v201 = vpop.permute.xlu0 %200
    %202 = vrot.lane.b32.xlu0 %v165, 112
    %v203 = vpop.permute.xlu0 %202
    %204 = vrot.lane.b32.xlu0 %v166, 112
    %v205 = vpop.permute.xlu0 %204
    %206 = vrot.lane.b32.xlu0 %v167, 112
    %v207 = vpop.permute.xlu0 %206
    %216 = vrot.lane.b32.xlu0 %v160, 16
    %v217 = vpop.permute.xlu0 %216
    %218 = vrot.lane.b32.xlu0 %v161, 16
    %v219 = vpop.permute.xlu0 %218
    %220 = vrot.lane.b32.xlu0 %v162, 16
    %v221 = vpop.permute.xlu0 %220
    %222 = vrot.lane.b32.xlu0 %v163, 16
    %v223 = vpop.permute.xlu0 %222
    %224 = vrot.lane.b32.xlu0 %v164, 16
    %v225 = vpop.permute.xlu0 %224
    %226 = vrot.lane.b32.xlu0 %v165, 16
    %v227 = vpop.permute.xlu0 %226
    %228 = vrot.lane.b32.xlu0 %v166, 16
    %v229 = vpop.permute.xlu0 %228
    %230 = vrot.lane.b32.xlu0 %v167, 16
    %v231 = vpop.permute.xlu0 %230
    %v240 = vsel %vm122, %v193, %v217
    %v241 = vsel %vm122, %v195, %v219
    %v242 = vsel %vm122, %v197, %v221
    %v243 = vsel %vm122, %v199, %v223
    %v244 = vsel %vm122, %v201, %v225
    %v245 = vsel %vm122, %v203, %v227
    %v246 = vsel %vm122, %v205, %v229
    %v247 = vsel %vm122, %v207, %v231
    %v248 = vperm.slane %v152, 0
    %v249 = vperm.slane %v153, 0
    %v250 = vperm.slane %v154, 0
    %v251 = vperm.slane %v155, 0
    %v252 = vperm.slane %v156, 0
    %v253 = vperm.slane %v157, 0
    %v254 = vperm.slane %v158, 0
    %v255 = vperm.slane %v159, 0
    %v256 = vmul.f32 %v240, %v248
    %v257 = vmul.f32 %v241, %v249
    %v258 = vmul.f32 %v242, %v250
    %v259 = vmul.f32 %v243, %v251
    %v260 = vmul.f32 %v244, %v252
    %v261 = vmul.f32 %v245, %v253
    %v262 = vmul.f32 %v246, %v254
    %v263 = vmul.f32 %v247, %v255
    %v264 = vadd.f32 %v176, %v256
    %v265 = vadd.f32 %v177, %v257
    %v266 = vadd.f32 %v178, %v258
    %v267 = vadd.f32 %v179, %v259
    %v268 = vadd.f32 %v180, %v260
    %v269 = vadd.f32 %v181, %v261
    %v270 = vadd.f32 %v182, %v262
    %v271 = vadd.f32 %v183, %v263
    %vm272 = vcmask 257024
    %273 = vst.msk [vmem:[#allocation7] sm:$0xf] %vm272, %v264
    %274 = vst.msk [vmem:[#allocation7 + $0x4] sm:$0xf] %vm272, %v265
    %275 = vst.msk [vmem:[#allocation7 + $0x8] sm:$0xf] %vm272, %v266
    %276 = vst.msk [vmem:[#allocation7 + $0xc] sm:$0xf] %vm272, %v267
    %277 = vst.msk [vmem:[#allocation7 + $0x10] sm:$0xf] %vm272, %v268
    %278 = vst.msk [vmem:[#allocation7 + $0x14] sm:$0xf] %vm272, %v269
    %279 = vst.msk [vmem:[#allocation7 + $0x18] sm:$0xf] %vm272, %v270
    %280 = vst.msk [vmem:[#allocation7 + $0x1c] sm:$0xf] %vm272, %v271
    %v281 = vld [vmem:[#allocation5] sm:$0x3]
    %v282 = vld [vmem:[#allocation5 + $0x2] sm:$0x3]
    %v283 = vld [vmem:[#allocation5 + $0x4] sm:$0x3]
    %v284 = vld [vmem:[#allocation5 + $0x6] sm:$0x3]
    %v285 = vld [vmem:[#allocation5 + $0x8] sm:$0x3]
    %v286 = vld [vmem:[#allocation5 + $0xa] sm:$0x3]
    %v287 = vld [vmem:[#allocation5 + $0xc] sm:$0x3]
    %v288 = vld [vmem:[#allocation5 + $0xe] sm:$0x3]
    %v289 = vmul.f32 %v281, %v168
    %v290 = vmul.f32 %v282, %v169
    %v291 = vmul.f32 %v283, %v170
    %v292 = vmul.f32 %v284, %v171
    %v293 = vmul.f32 %v285, %v172
    %v294 = vmul.f32 %v286, %v173
    %v295 = vmul.f32 %v287, %v174
    %v296 = vmul.f32 %v288, %v175
    %305 = vrot.lane.b32.xlu0 %v281, 112
    %v306 = vpop.permute.xlu0 %305
    %307 = vrot.lane.b32.xlu0 %v282, 112
    %v308 = vpop.permute.xlu0 %307
    %309 = vrot.lane.b32.xlu0 %v283, 112
    %v310 = vpop.permute.xlu0 %309
    %311 = vrot.lane.b32.xlu0 %v284, 112
    %v312 = vpop.permute.xlu0 %311
    %313 = vrot.lane.b32.xlu0 %v285, 112
    %v314 = vpop.permute.xlu0 %313
    %315 = vrot.lane.b32.xlu0 %v286, 112
    %v316 = vpop.permute.xlu0 %315
    %317 = vrot.lane.b32.xlu0 %v287, 112
    %v318 = vpop.permute.xlu0 %317
    %319 = vrot.lane.b32.xlu0 %v288, 112
    %v320 = vpop.permute.xlu0 %319
    %329 = vrot.lane.b32.xlu0 %v281, 16
    %v330 = vpop.permute.xlu0 %329
    %331 = vrot.lane.b32.xlu0 %v282, 16
    %v332 = vpop.permute.xlu0 %331
    %333 = vrot.lane.b32.xlu0 %v283, 16
    %v334 = vpop.permute.xlu0 %333
    %335 = vrot.lane.b32.xlu0 %v284, 16
    %v336 = vpop.permute.xlu0 %335
    %337 = vrot.lane.b32.xlu0 %v285, 16
    %v338 = vpop.permute.xlu0 %337
    %339 = vrot.lane.b32.xlu0 %v286, 16
    %v340 = vpop.permute.xlu0 %339
    %341 = vrot.lane.b32.xlu0 %v287, 16
    %v342 = vpop.permute.xlu0 %341
    %343 = vrot.lane.b32.xlu0 %v288, 16
    %v344 = vpop.permute.xlu0 %343
    %v353 = vsel %vm122, %v306, %v330
    %v354 = vsel %vm122, %v308, %v332
    %v355 = vsel %vm122, %v310, %v334
    %v356 = vsel %vm122, %v312, %v336
    %v357 = vsel %vm122, %v314, %v338
    %v358 = vsel %vm122, %v316, %v340
    %v359 = vsel %vm122, %v318, %v342
    %v360 = vsel %vm122, %v320, %v344
    %v361 = vmul.f32 %v353, %v248
    %v362 = vmul.f32 %v354, %v249
    %v363 = vmul.f32 %v355, %v250
    %v364 = vmul.f32 %v356, %v251
    %v365 = vmul.f32 %v357, %v252
    %v366 = vmul.f32 %v358, %v253
    %v367 = vmul.f32 %v359, %v254
    %v368 = vmul.f32 %v360, %v255
    %v369 = vadd.f32 %v289, %v361
    %v370 = vadd.f32 %v290, %v362
    %v371 = vadd.f32 %v291, %v363
    %v372 = vadd.f32 %v292, %v364
    %v373 = vadd.f32 %v293, %v365
    %v374 = vadd.f32 %v294, %v366
    %v375 = vadd.f32 %v295, %v367
    %v376 = vadd.f32 %v296, %v368
    %vm377 = vcmask 254976
    %378 = vst.msk [vmem:[#allocation8] sm:$0x3] %vm377, %v369
    %379 = vst.msk [vmem:[#allocation8 + $0x2] sm:$0x3] %vm377, %v370
    %380 = vst.msk [vmem:[#allocation8 + $0x4] sm:$0x3] %vm377, %v371
    %381 = vst.msk [vmem:[#allocation8 + $0x6] sm:$0x3] %vm377, %v372
    %382 = vst.msk [vmem:[#allocation8 + $0x8] sm:$0x3] %vm377, %v373
    %383 = vst.msk [vmem:[#allocation8 + $0xa] sm:$0x3] %vm377, %v374
    %384 = vst.msk [vmem:[#allocation8 + $0xc] sm:$0x3] %vm377, %v375
    %385 = vst.msk [vmem:[#allocation8 + $0xe] sm:$0x3] %vm377, %v376
    // Predicated region
    $region22: #{rotary_embedding_neox.1} parent=1 // pred_check
      _
    $region23: #{rotary_embedding_neox.1} parent=1 // pred_check_branch
      %387 = sbr.rel (0) target = $region25
    $region24: #{rotary_embedding_neox.1} parent=1 // pred_region
      %389 = vsyncadd [#allocation4], 0
      %s390 = sshll.u32 [#allocation7], 4
      %s391 = int_to_ptr.vmem [resolvable:$true] %s390
      %s392 = sshll.u32 %s3, 4
      %s393 = int_to_ptr.hbm [resolvable:$true] %s392
      %398 = dma.vmem_to_hbm [thread:$0]  %s391, 512, %s393, [#allocation4], 64, 64, 4
    $region25: #{rotary_embedding_neox.1} parent=1 // pred_fallthru
      _
    // Predicated region
    $region26: #{rotary_embedding_neox.1} parent=1 // pred_check
      _
    $region27: #{rotary_embedding_neox.1} parent=1 // pred_check_branch
      %400 = sbr.rel (0) target = $region29
    $region28: #{rotary_embedding_neox.1} parent=1 // pred_region
      %402 = vsyncadd [#allocation9], 0
      %s403 = sshll.u32 [#allocation8], 4
      %s404 = int_to_ptr.vmem [resolvable:$true] %s403
      %s405 = sshll.u32 %s4, 4
      %s406 = int_to_ptr.hbm [resolvable:$true] %s405
      %411 = dma.vmem_to_hbm [thread:$0]  %s404, 256, %s406, [#allocation9], 32, 32, 2
    $region29: #{rotary_embedding_neox.1} parent=1 // pred_fallthru
      _
    // Predicated region
    $region30: #{rotary_embedding_neox.1} parent=1 // pred_check
      _
    $region31: #{rotary_embedding_neox.1} parent=1 // pred_check_branch
      %413 = sbr.rel (0) target = $region33
    $region32: #{rotary_embedding_neox.1} parent=1 // pred_region
      %415 = dma.done [#allocation4], 512
    $region33: #{rotary_embedding_neox.1} parent=1 // pred_fallthru
      _
    // Predicated region
    $region34: #{rotary_embedding_neox.1} parent=1 // pred_check
      _
    $region35: #{rotary_embedding_neox.1} parent=1 // pred_check_branch
      %417 = sbr.rel (0) target = $region37
    $region36: #{rotary_embedding_neox.1} parent=1 // pred_region
      %419 = dma.done [#allocation9], 256
    $region37: #{rotary_embedding_neox.1} parent=1 // pred_fallthru
      _
    %420 = vsyncpa [#allocation3], 1
    %421 = vsyncpa [#allocation6], 1
    %422 = vsyncpa [#allocation4], 1
    %423 = vsyncpa [#allocation9], 1

</llo_original>
